<compile_context>
chip_gen: v6e
topology: v6e:2x2x1
jax: 0.10.0
libtpu: 0.0.40
codegen_flags: <defaults>
</compile_context>

<pallas_src>
import jax
import jax.numpy as jnp
from jax.experimental import pallas as pl
from jax.experimental.pallas import tpu as pltpu

_LANE = 128
_VMEM_BUDGET = 12 * 1024 * 1024  # stay under the v5e 16 MiB scoped-VMEM default


def _round_up(x: int, m: int) -> int:
    return ((x + m - 1) // m) * m


def _decoder_kernel_ns(c_ref, w_ref, b_ref, out_ref):
    # c_ref: (N, H)  w_ref: (S, H)  b_ref: (1, S) f32  out_ref: (N, S) f32
    acc = jax.lax.dot_general(
        c_ref[...], w_ref[...],
        dimension_numbers=(((1,), (1,)), ((), ())),   # contract on H (no .T)
        preferred_element_type=jnp.float32,
    )
    out_ref[...] = (acc + b_ref[...]).astype(out_ref.dtype)


def _decoder_kernel_sn(w_ref, c_ref, b_ref, out_ref):
    # w_ref: (S, H)  c_ref: (tN, H)  b_ref: (S, 1) f32  out_ref: (S, tN) f32
    acc = jax.lax.dot_general(
        w_ref[...], c_ref[...],
        dimension_numbers=(((1,), (1,)), ((), ())),   # contract on H
        preferred_element_type=jnp.float32,
    )
    out_ref[...] = (acc + b_ref[...]).astype(out_ref.dtype)


def _xla_reference(C, W, b):
    return (C @ W.T + b).T[:, :, None]


def linear_decoder_forward(C, W, b, t=None, mask=None, *,
                           compute_dtype=jnp.bfloat16,
                           force_pallas=False):
    """Pallas implementation of LinearDecoder.forward.

    C: (N, H)  W: (S, H) nn.Linear weight  b: (S,) bias
    returns (S, N, 1) float32 == torch: lin(C).T.unsqueeze(-1)
    t, mask: accepted but unused (the PyTorch forward ignores them).
    """
    del t, mask  # unused by the reference forward pass

    N, H = C.shape
    S = W.shape[0]
    out_dtype = jnp.float32

    cbytes = jnp.dtype(compute_dtype).itemsize
    w_vmem = 2 * S * H * cbytes  # double-buffered resident weight block

    # Tiny problems: launch + layout glue dominate -> fused XLA dot is faster.
    # Also fall back if the decoder weight cannot be kept VMEM-resident.
    if ((not force_pallas and N * S * H < 1_000_000)
            or w_vmem > _VMEM_BUDGET - 2 * 1024 * 1024):
        # TODO(synk): add a K-tiled accumulator path for decoder weights too
        # large to keep resident in VMEM (never the case for this module).
        return _xla_reference(C.astype(out_dtype), W.astype(out_dtype),
                              b.astype(out_dtype))

    Cc = C if C.dtype == compute_dtype else C.astype(compute_dtype)
    Wc = W if W.dtype == compute_dtype else W.astype(compute_dtype)
    bf = b.astype(jnp.float32)

    if N >= _LANE:
        # ---- (S, N) orientation: lane axis = N, final reshape is free. ----
        Np_min = _round_up(N, _LANE)
        tN = max(_LANE, (min(512, Np_min) // _LANE) * _LANE)
        # >= 2 grid steps when N allows (v7x has 2 TensorCores per chip).
        if Np_min // tN < 2 and Np_min >= 2 * _LANE:
            tN = max(_LANE, (Np_min // 2 // _LANE) * _LANE)

        def vmem_bytes(tn):
            return (2 * tn * H * cbytes      # C tile (double-buffered)
                    + w_vmem                 # resident W
                    + 2 * S * tn * 4         # out tile f32
                    + 2 * S * 4)             # bias
        while tN > _LANE and vmem_bytes(tN) > _VMEM_BUDGET:
            tN -= _LANE
        if vmem_bytes(tN) > _VMEM_BUDGET:
            return _xla_reference(C.astype(out_dtype), W.astype(out_dtype),
                                  b.astype(out_dtype))

        Np = _round_up(N, tN)
        if Np != N:                          # pad only when strictly needed
            Cc = jnp.pad(Cc, ((0, Np - N), (0, 0)))

        cost = pl.CostEstimate(
            flops=2 * Np * S * H, transcendentals=0,
            bytes_accessed=Np * H * cbytes + S * H * cbytes + S * 4 + S * Np * 4)

        out_sn = pl.pallas_call(
            _decoder_kernel_sn,
            out_shape=jax.ShapeDtypeStruct((S, Np), out_dtype),
            grid_spec=pltpu.PrefetchScalarGridSpec(
                num_scalar_prefetch=0,
                grid=(Np // tN,),
                in_specs=[
                    pl.BlockSpec((S, H), lambda i: (0, 0)),    # W, VMEM-resident
                    pl.BlockSpec((tN, H), lambda i: (i, 0)),   # C tile
                    pl.BlockSpec((S, 1), lambda i: (0, 0)),    # bias, resident
                ],
                out_specs=pl.BlockSpec((S, tN), lambda i: (0, i)),
            ),
            compiler_params=pltpu.CompilerParams(
                dimension_semantics=("parallel",)),
            cost_estimate=cost,
        )(Wc, Cc, bf.reshape(S, 1))

        if Np != N:
            out_sn = out_sn[:, :N]
        return out_sn[:, :, None]            # free reshape to (S, N, 1)

    # ---- N < 128: single lane-dense (N, S) block, no padding needed. ----
    if 2 * N * H * cbytes + w_vmem + 2 * N * S * 4 + 2 * S * 4 > _VMEM_BUDGET:
        return _xla_reference(C.astype(out_dtype), W.astype(out_dtype),
                              b.astype(out_dtype))

    cost = pl.CostEstimate(
        flops=2 * N * S * H, transcendentals=0,
        bytes_accessed=N * H * cbytes + S * H * cbytes + S * 4 + N * S * 4)

    out_ns = pl.pallas_call(
        _decoder_kernel_ns,
        out_shape=jax.ShapeDtypeStruct((N, S), out_dtype),
        grid_spec=pltpu.PrefetchScalarGridSpec(
            num_scalar_prefetch=0,
            grid=(1,),
            in_specs=[
                pl.BlockSpec((N, H), lambda i: (0, 0)),   # C (full block)
                pl.BlockSpec((S, H), lambda i: (0, 0)),   # W (full block)
                pl.BlockSpec((1, S), lambda i: (0, 0)),   # bias row
            ],
            out_specs=pl.BlockSpec((N, S), lambda i: (0, 0)),
        ),
        compiler_params=pltpu.CompilerParams(
            dimension_semantics=("arbitrary",)),
        cost_estimate=cost,
    )(Cc, Wc, bf.reshape(1, S))

    # glue: lin(C).T.unsqueeze(-1) -> (S, N, 1); tiny because N < 128.
    return out_ns.T[:, :, None]


if __name__ == "__main__":
    hidden_dim = 32
    max_seq_len = 16
    n_units = 8

    key = jax.random.PRNGKey(0)
    k_c, k_w, k_b, k_t, k_c2 = jax.random.split(key, 5)

    # nn.Linear-style init (uniform +/- 1/sqrt(H)).
    bound = 1.0 / jnp.sqrt(jnp.float32(hidden_dim))
    W = jax.random.uniform(k_w, (max_seq_len, hidden_dim), jnp.float32,
                           -bound, bound)
    b = jax.random.uniform(k_b, (max_seq_len,), jnp.float32, -bound, bound)

    C = jax.random.normal(k_c, (n_units, hidden_dim), jnp.float32)
    t = jax.random.normal(k_t, (n_units, max_seq_len), jnp.float32)   # unused
    mask = jnp.ones((n_units, max_seq_len), jnp.float32)              # unused

    def bf16_ref(C_, W_, b_):
        Cb = C_.astype(jnp.bfloat16).astype(jnp.float32)
        Wb = W_.astype(jnp.bfloat16).astype(jnp.float32)
        return (Cb @ Wb.T + b_).T[:, :, None]

    # Path 1: N < 128 -> lane-dense (N, S) kernel.
    out = jax.block_until_ready(
        linear_decoder_forward(C, W, b, t, mask, force_pallas=True))
    assert out.shape == (max_seq_len, n_units, 1), out.shape
    assert jnp.allclose(out, bf16_ref(C, W, b), atol=1e-4, rtol=1e-4)
    assert jnp.allclose(out, (C @ W.T + b).T[:, :, None], atol=5e-2, rtol=5e-2)

    # Path 2: N >= 128 -> direct (S, N)-orientation kernel, 2 "parallel" steps.
    n_big = 256
    C2 = jax.random.normal(k_c2, (n_big, hidden_dim), jnp.float32)
    out2 = jax.block_until_ready(
        linear_decoder_forward(C2, W, b, force_pallas=True))
    assert out2.shape == (max_seq_len, n_big, 1), out2.shape
    assert jnp.allclose(out2, bf16_ref(C2, W, b), atol=1e-4, rtol=1e-4)
    assert jnp.allclose(out2, (C2 @ W.T + b).T[:, :, None], atol=5e-2, rtol=5e-2)

    print("KERNEL_OK")
</pallas_src>

<mosaic_0001>
module attributes {stable_mosaic.version = 11 : i64} {
  func.func @_decoder_kernel_ns(%arg0: i32, %arg1: memref<8x32xbf16, #tpu.memory_space<vmem>>, %arg2: memref<16x32xbf16, #tpu.memory_space<vmem>>, %arg3: memref<1x16xf32, #tpu.memory_space<vmem>>, %arg4: memref<8x16xf32, #tpu.memory_space<vmem>>) attributes {dimension_semantics = [#tpu.dimension_semantics<arbitrary>], iteration_bounds = array<i64: 1>, scalar_prefetch = 0 : i64, scratch_operands = 0 : i64, tpu.core_type = #tpu.core_type<tc>, window_params = [{pipeline_mode = #tpu.pipeline_mode<synchronous>, transform_indices = @transform_0, window_bounds = array<i64: 8, 32>}, {pipeline_mode = #tpu.pipeline_mode<synchronous>, transform_indices = @transform_1, window_bounds = array<i64: 16, 32>}, {pipeline_mode = #tpu.pipeline_mode<synchronous>, transform_indices = @transform_2, window_bounds = array<i64: 1, 16>}, {pipeline_mode = #tpu.pipeline_mode<synchronous>, transform_indices = @transform_3, window_bounds = array<i64: 8, 16>}]} {
    %c0 = arith.constant 0 : index
    %c0_0 = arith.constant 0 : index
    %0 = vector.load %arg1[%c0, %c0_0] : memref<8x32xbf16, #tpu.memory_space<vmem>>, vector<8x32xbf16>
    %c0_1 = arith.constant 0 : index
    %c0_2 = arith.constant 0 : index
    %1 = vector.load %arg2[%c0_1, %c0_2] : memref<16x32xbf16, #tpu.memory_space<vmem>>, vector<16x32xbf16>
    %cst = arith.constant dense<0.000000e+00> : vector<8x16xf32>
    %2 = tpu.matmul %0, %1, %cst {dimension_numbers = #tpu.dot_dimension_numbers<[1], [1], [0], [0], [0, 0, 1, 0], [], []>} : vector<8x32xbf16>, vector<16x32xbf16>, vector<8x16xf32> -> vector<8x16xf32>
    %c0_3 = arith.constant 0 : index
    %c0_4 = arith.constant 0 : index
    %3 = vector.load %arg3[%c0_3, %c0_4] : memref<1x16xf32, #tpu.memory_space<vmem>>, vector<1x16xf32>
    %4 = vector.broadcast %3 : vector<1x16xf32> to vector<8x16xf32>
    %5 = arith.addf %2, %4 : vector<8x16xf32>
    %c0_5 = arith.constant 0 : index
    %c0_6 = arith.constant 0 : index
    %6 = vector.load %arg4[%c0_5, %c0_6] : memref<8x16xf32, #tpu.memory_space<vmem>>, vector<8x16xf32>
    tpu.vector_store %arg4[%c0_5, %c0_6], %5 {strides = array<i32>} : memref<8x16xf32, #tpu.memory_space<vmem>>, vector<8x16xf32>,
    return
  }
  func.func @transform_0(%arg0: i32) -> (i32, i32) {
    %c0_i32 = arith.constant 0 : i32
    %c0_i32_0 = arith.constant 0 : i32
    %c0_i32_1 = arith.constant 0 : i32
    return %c0_i32, %c0_i32_0 : i32, i32
  }
  func.func @transform_1(%arg0: i32) -> (i32, i32) {
    %c0_i32 = arith.constant 0 : i32
    %c0_i32_0 = arith.constant 0 : i32
    %c0_i32_1 = arith.constant 0 : i32
    return %c0_i32, %c0_i32_0 : i32, i32
  }
  func.func @transform_2(%arg0: i32) -> (i32, i32) {
    %c0_i32 = arith.constant 0 : i32
    %c0_i32_0 = arith.constant 0 : i32
    %c0_i32_1 = arith.constant 0 : i32
    return %c0_i32, %c0_i32_0 : i32, i32
  }
  func.func @transform_3(%arg0: i32) -> (i32, i32) {
    %c0_i32 = arith.constant 0 : i32
    %c0_i32_0 = arith.constant 0 : i32
    %c0_i32_1 = arith.constant 0 : i32
    return %c0_i32, %c0_i32_0 : i32, i32
  }
}

</mosaic_0001>

<llo_original>
// kernel: tpu_custom_call.1
$region0: #{tpu_custom_call.1}
  #allocation0 [shape = 'u32[]', space=smem, size = 0x4, offset = 0x4, fixed_abs, tag = 'smem constant byte address 0x4 - core index']
  #allocation1 [shape = 'u32[144,128]{1,0:T(1,128)}', space=vmem, size = 0x12000, scoped, tag = 'internal scratch']
  %s0 = inlined_call_operand.hbm [shape: bf16[8,32], index: 0, kind: input, shape index: {}]
  %s1 = inlined_call_operand.hbm [shape: bf16[16,32], index: 1, kind: input, shape index: {}]
  %s2 = inlined_call_operand.vmem [shape: f32[1,16], index: 2, kind: input, shape index: {}]
  %s3 = inlined_call_operand.hbm [shape: f32[8,16], index: 3, kind: output, shape index: {}]
  %s4 = sld [smem:[#allocation0]]
  $region30: #{tpu_custom_call.1} parent=0
    _
  %s6 = ssub.s32 1, %s4
  %s7 = scalar_select 0, %s6, %s4
  $region1: #{tpu_custom_call.1} parent=0
    #allocation2 [shape = 'u8[2048]{0}', space=vmem, size = 0x800, scoped, tag = 'input window, operand 0, single buffered']
    #allocation3 [shape = 's32[1]{0}', space=sflag, size = 0x4, scoped, tag = 'scoped memory for tpu_custom_call.1']
    #allocation4 [shape = 's32[1]{0}', space=sflag, size = 0x4, scoped, tag = 'scoped memory for tpu_custom_call.1']
    #allocation5 [shape = 'u8[4096]{0}', space=vmem, size = 0x1000, scoped, tag = 'input window, operand 1, single buffered']
    #allocation6 [shape = 's32[1]{0}', space=sflag, size = 0x4, scoped, tag = 'scoped memory for tpu_custom_call.1']
    #allocation7 [shape = 'u8[4096]{0}', space=vmem, size = 0x1000, scoped, tag = 'output window, operand 0, single buffered']
    %8 = vsyncpa [#allocation3], 0
    %9 = vsyncpa [#allocation6], 0
    %10 = vsyncpa [#allocation4], 0
    // Predicated region
    $region2: #{tpu_custom_call.1} parent=1 // pred_check
      _
    $region3: #{tpu_custom_call.1} parent=1 // pred_check_branch
      %12 = sbr.rel (0) target = $region5
    $region4: #{tpu_custom_call.1} parent=1 // pred_region
      %s14 = ssub.s32 64, 64
      %15 = vsyncadd [#allocation3], %s14
      %s17 = sshll.u32 [#allocation2], 4
      %s18 = int_to_ptr.vmem [resolvable:$true] %s17
      %20 = dma.hbm_to_vmem [thread:$0]  %s0, 64, %s18, [#allocation3]
    $region5: #{tpu_custom_call.1} parent=1 // pred_fallthru
      _
    // Predicated region
    $region6: #{tpu_custom_call.1} parent=1 // pred_check
      _
    $region7: #{tpu_custom_call.1} parent=1 // pred_check_branch
      %22 = sbr.rel (0) target = $region9
    $region8: #{tpu_custom_call.1} parent=1 // pred_region
      %s24 = ssub.s32 128, 128
      %25 = vsyncadd [#allocation6], %s24
      %s26 = sshll.u32 [#allocation5], 4
      %s27 = int_to_ptr.vmem [resolvable:$true] %s26
      %32 = dma.hbm_to_vmem [thread:$0]  %s1, 128, %s27, [#allocation6], 64, 64, 4
    $region9: #{tpu_custom_call.1} parent=1 // pred_fallthru
      _
    // Predicated region
    $region10: #{tpu_custom_call.1} parent=1 // pred_check
      _
    $region11: #{tpu_custom_call.1} parent=1 // pred_check_branch
      %34 = sbr.rel (0) target = $region13
    $region12: #{tpu_custom_call.1} parent=1 // pred_region
      _
    $region13: #{tpu_custom_call.1} parent=1 // pred_fallthru
      _
    // Predicated region
    $region14: #{tpu_custom_call.1} parent=1 // pred_check
      _
    $region15: #{tpu_custom_call.1} parent=1 // pred_check_branch
      %36 = sbr.rel (0) target = $region17
    $region16: #{tpu_custom_call.1} parent=1 // pred_region
      %37 = dma.done [#allocation3], 64
    $region17: #{tpu_custom_call.1} parent=1 // pred_fallthru
      _
    // Predicated region
    $region18: #{tpu_custom_call.1} parent=1 // pred_check
      _
    $region19: #{tpu_custom_call.1} parent=1 // pred_check_branch
      %39 = sbr.rel (0) target = $region21
    $region20: #{tpu_custom_call.1} parent=1 // pred_region
      %40 = dma.done [#allocation6], 128
    $region21: #{tpu_custom_call.1} parent=1 // pred_fallthru
      _
    %v42 = vld [vmem:[#allocation2] sm:$0xf]
    %v43 = vld [vmem:[#allocation5] sm:$0xf]
    %v44 = vld [vmem:[#allocation5 + $0x4] sm:$0xf]
    %v45 = vld [vmem:[%s2] sm:$0x1]
    %v47 = vlaneseq
    %v48 = vshrl.u32 %v47, 7
    %v49 = vsub.s32 0, %v48
    %v50 = vrot.slane %v45, %v49
    %v54 = vunpack.c.l.b16 %v43
    %v55 = vunpack.c.l.b16 %v44
    %v56 = vpack.c.b16 %v55, %v54
    %vm57 = vcmask 261120
    %v59 = vsel %vm57, %v42, 0
    %v62 = vsel %vm57, %v56, 0
    %64 = vmatprep.subr.bf16.mxu0 0
    %65 = vmatpush1.bf16.xpose.msra.mxu0 0
    %66 = vmatprep.subr.bf16.mxu0 0
    %67 = vmatpush1.bf16.xpose.msra.mxu0 0
    %68 = vmatprep.subr.bf16.mxu0 0
    %69 = vmatpush1.bf16.xpose.msra.mxu0 0
    %70 = vmatprep.subr.bf16.mxu0 0
    %71 = vmatpush1.bf16.xpose.msra.mxu0 0
    %72 = vmatprep.subr.bf16.mxu0 0
    %73 = vmatpush1.bf16.xpose.msra.mxu0 0
    %74 = vmatprep.subr.bf16.mxu0 0
    %75 = vmatpush1.bf16.xpose.msra.mxu0 0
    %76 = vmatprep.subr.bf16.mxu0 0
    %77 = vmatpush1.bf16.xpose.msra.mxu0 0
    %78 = vmatprep.subr.bf16.mxu0 0
    %79 = vmatpush1.bf16.xpose.msra.mxu0 %v62
    %80 = vmatprep.subr.bf16.mxu0 0
    %81 = vmatpush2.bf16.xpose.msra.mxu0 0
    %82 = vmatprep.subr.bf16.mxu0 0
    %83 = vmatpush2.bf16.xpose.msra.mxu0 0
    %84 = vmatprep.subr.bf16.mxu0 0
    %85 = vmatpush2.bf16.xpose.msra.mxu0 0
    %86 = vmatprep.subr.bf16.mxu0 0
    %87 = vmatpush2.bf16.xpose.msra.mxu0 0
    %88 = vmatprep.subr.bf16.mxu0 0
    %89 = vmatpush2.bf16.xpose.msra.mxu0 0
    %90 = vmatprep.subr.bf16.mxu0 0
    %91 = vmatpush2.bf16.xpose.msra.mxu0 0
    %92 = vmatprep.subr.bf16.mxu0 0
    %93 = vmatpush2.bf16.xpose.msra.mxu0 0
    %94 = vmatprep.subr.bf16.mxu0 0
    %95 = vmatpush2.bf16.xpose.msra.mxu0 0
    %96 = vmatprep.mubr.bf16.mxu0 0
    %97 = vmatmul.mubr.bf16.gmra.mxu0 %v59
    %v98 = vpop.f32.mrf.mxu0
    %v99 = vadd.f32 %v50, %v98
    %v100 = vpop.f32.mrf.mxu0
    %v101 = vpop.f32.mrf.mxu0
    %v102 = vpop.f32.mrf.mxu0
    %103 = vdwg.mxu0
    %vm104 = vcmask 130048
    %105 = vst.msk [vmem:[#allocation7] sm:$0xff] %vm104, %v99
    // Predicated region
    $region22: #{tpu_custom_call.1} parent=1 // pred_check
      _
    $region23: #{tpu_custom_call.1} parent=1 // pred_check_branch
      %107 = sbr.rel (0) target = $region25
    $region24: #{tpu_custom_call.1} parent=1 // pred_region
      %s109 = ssub.s32 128, 128
      %110 = vsyncadd [#allocation4], %s109
      %s112 = sshll.u32 [#allocation7], 4
      %s113 = int_to_ptr.vmem [resolvable:$true] %s112
      %115 = dma.vmem_to_hbm [thread:$0]  %s113, 128, %s3, [#allocation4]
    $region25: #{tpu_custom_call.1} parent=1 // pred_fallthru
      _
    // Predicated region
    $region26: #{tpu_custom_call.1} parent=1 // pred_check
      _
    $region27: #{tpu_custom_call.1} parent=1 // pred_check_branch
      %117 = sbr.rel (0) target = $region29
    $region28: #{tpu_custom_call.1} parent=1 // pred_region
      %118 = dma.done [#allocation4], 128
    $region29: #{tpu_custom_call.1} parent=1 // pred_fallthru
      _
    %119 = vsyncpa [#allocation3], 1
    %120 = vsyncpa [#allocation6], 1
    %121 = vsyncpa [#allocation4], 1

</llo_original>
